<compile_context>
chip_gen: v5e
topology: v5e:2x2
jax: 0.10.0
libtpu: 0.0.40
codegen_flags: <defaults>
</compile_context>

<pallas_src>
import functools

import jax
import jax.numpy as jnp
from jax import lax
from jax.experimental import pallas as pl
from jax.experimental.pallas import tpu as pltpu


def _round_up(x: int, m: int) -> int:
    return ((x + m - 1) // m) * m


def _discriminator_kernel(x_ref, w1_ref, b1_ref, w2_ref, b2_ref, o_ref):
    # x_ref  : [TB, dim]      input dtype (cast to weight dtype for the MXU)
    # w1_ref : [dim, dim]     fc1.weight, native [out, in] layout
    # b1_ref : [1, dim]       f32
    # w2_ref : [N_PAD, dim]   fc2.weight zero-padded to lane-dense N_PAD rows
    # b2_ref : [1, N_PAD]     f32 (zero-padded)
    # o_ref  : [TB, N_PAD]
    dn = (((1,), (1,)), ((), ()))  # contract last dim of x with last (in) dim of w

    w1 = w1_ref[...]
    x = x_ref[...].astype(w1.dtype)
    # fc1 (+bias) + ReLU in f32 accumulator.  GRL is identity in forward;
    # Dropout(0.5) is identity in eval mode.
    h = lax.dot_general(x, w1, dn, preferred_element_type=jnp.float32)
    h = jnp.maximum(h + b1_ref[...], 0.0)

    w2 = w2_ref[...]
    out = lax.dot_general(h.astype(w2.dtype), w2, dn,
                          preferred_element_type=jnp.float32)
    o_ref[...] = (out + b2_ref[...]).astype(o_ref.dtype)


@functools.partial(jax.jit, static_argnames=("compute_dtype", "batch_tile"))
def discriminator_forward(feature, w1, b1, w2, b2,
                          *, compute_dtype=None, batch_tile=None):
    """Forward pass of Discriminator.

    feature: [B, dim]
    w1:      [dim, dim]       (fc1.weight, PyTorch [out, in] layout)
    b1:      [dim]
    w2:      [n_classes, dim] (fc2.weight, PyTorch [out, in] layout)
    b2:      [n_classes]
    compute_dtype: e.g. jnp.bfloat16 to feed the MXU bf16 operands
                   (f32 accumulation); None keeps the parameter dtype.
    """
    B, dim = feature.shape
    n_classes = w2.shape[0]

    # ---- lane-dense fc2 output: pad n_classes up to a multiple of 128 ----
    n_pad = _round_up(max(n_classes, 1), 128)
    if n_pad != n_classes:
        w2p = jnp.zeros((n_pad, dim), w2.dtype).at[:n_classes, :].set(w2)
        b2p = jnp.zeros((n_pad,), b2.dtype).at[:n_classes].set(b2)
    else:
        w2p, b2p = w2, b2

    # ---- optional bf16 MXU operands (hoist this cast to param load in prod) ----
    if compute_dtype is not None:
        w1 = w1.astype(compute_dtype)
        w2p = w2p.astype(compute_dtype)

    b1r = b1.reshape(1, dim).astype(jnp.float32)
    b2r = b2p.reshape(1, n_pad).astype(jnp.float32)

    # ---- batch tiling: biggest tile that comfortably fits scoped VMEM ----
    if batch_tile is None:
        batch_tile = min(_round_up(B, 8), 512)
    tb = batch_tile
    b_pad = _round_up(B, tb)
    x = feature if b_pad == B else jnp.pad(feature, ((0, b_pad - B), (0, 0)))

    grid = (b_pad // tb,)

    out_padded = pl.pallas_call(
        _discriminator_kernel,
        out_shape=jax.ShapeDtypeStruct((b_pad, n_pad), feature.dtype),
        grid=grid,
        in_specs=[
            pl.BlockSpec((tb, dim), lambda i: (i, 0)),        # x: tiled over batch
            pl.BlockSpec((dim, dim), lambda i: (0, 0)),       # w1: resident
            pl.BlockSpec((1, dim), lambda i: (0, 0)),         # b1: resident
            pl.BlockSpec((n_pad, dim), lambda i: (0, 0)),     # w2 (padded): resident
            pl.BlockSpec((1, n_pad), lambda i: (0, 0)),       # b2 (padded): resident
        ],
        out_specs=pl.BlockSpec((tb, n_pad), lambda i: (i, 0)),
        compiler_params=pltpu.CompilerParams(
            dimension_semantics=("parallel",)),
    )(x, w1, b1r, w2p, b2r)

    return out_padded[:B, :n_classes]


def reference_forward(feature, w1, b1, w2, b2):
    h = jnp.maximum(feature @ w1.T + b1, 0.0)
    return h @ w2.T + b2


if __name__ == "__main__":
    # Small shapes consistent with the module (Linear dim->dim, dim->n_classes).
    B, DIM, N_CLASSES = 8, 32, 3

    key = jax.random.PRNGKey(0)
    k_x, k_w1, k_w2 = jax.random.split(key, 3)

    feature = jax.random.normal(k_x, (B, DIM), dtype=jnp.float32)

    # Deterministic parameter init mirroring the PyTorch __init__:
    #   fc1.weight ~ N(0, 0.01), fc1.bias = 0
    #   fc2.weight ~ N(0, 0.3),  fc2.bias = 0
    w1 = 0.01 * jax.random.normal(k_w1, (DIM, DIM), dtype=jnp.float32)
    b1 = jnp.zeros((DIM,), dtype=jnp.float32)
    w2 = 0.3 * jax.random.normal(k_w2, (N_CLASSES, DIM), dtype=jnp.float32)
    b2 = jnp.zeros((N_CLASSES,), dtype=jnp.float32)

    ref = reference_forward(feature, w1, b1, w2, b2)

    # 1) f32 path: must match the reference tightly.
    out = jax.block_until_ready(discriminator_forward(feature, w1, b1, w2, b2))
    assert out.shape == (B, N_CLASSES)
    assert jnp.allclose(out, ref, atol=1e-5, rtol=1e-5), "f32 mismatch vs reference"

    # 2) bf16 MXU operands (f32 accumulation): looser tolerance.
    out_bf16 = jax.block_until_ready(
        discriminator_forward(feature, w1, b1, w2, b2,
                              compute_dtype=jnp.bfloat16))
    assert out_bf16.shape == (B, N_CLASSES)
    assert jnp.allclose(out_bf16, ref, atol=2e-2, rtol=2e-2), "bf16 mismatch vs reference"

    # 3) Batch not a multiple of the tile: exercises batch padding + slice-back.
    feature2 = jax.random.normal(jax.random.PRNGKey(1), (B + 3, DIM), dtype=jnp.float32)
    ref2 = reference_forward(feature2, w1, b1, w2, b2)
    out2 = jax.block_until_ready(
        discriminator_forward(feature2, w1, b1, w2, b2, batch_tile=8))
    assert out2.shape == (B + 3, N_CLASSES)
    assert jnp.allclose(out2, ref2, atol=1e-5, rtol=1e-5), "padded-batch mismatch"

    print("KERNEL_OK")
</pallas_src>

<mosaic_0001>
module attributes {stable_mosaic.version = 11 : i64} {
  func.func @_discriminator_kernel(%arg0: i32, %arg1: memref<8x32xf32, #tpu.memory_space<vmem>>, %arg2: memref<32x32xf32, #tpu.memory_space<vmem>>, %arg3: memref<1x32xf32, #tpu.memory_space<vmem>>, %arg4: memref<128x32xf32, #tpu.memory_space<vmem>>, %arg5: memref<1x128xf32, #tpu.memory_space<vmem>>, %arg6: memref<8x128xf32, #tpu.memory_space<vmem>>) attributes {dimension_semantics = [#tpu.dimension_semantics<parallel>], iteration_bounds = array<i64: 1>, scalar_prefetch = 0 : i64, scratch_operands = 0 : i64, tpu.core_type = #tpu.core_type<tc>, window_params = [{transform_indices = @transform_0, window_bounds = array<i64: 8, 32>}, {pipeline_mode = #tpu.pipeline_mode<synchronous>, transform_indices = @transform_1, window_bounds = array<i64: 32, 32>}, {pipeline_mode = #tpu.pipeline_mode<synchronous>, transform_indices = @transform_2, window_bounds = array<i64: 1, 32>}, {pipeline_mode = #tpu.pipeline_mode<synchronous>, transform_indices = @transform_3, window_bounds = array<i64: 128, 32>}, {pipeline_mode = #tpu.pipeline_mode<synchronous>, transform_indices = @transform_4, window_bounds = array<i64: 1, 128>}, {transform_indices = @transform_5, window_bounds = array<i64: 8, 128>}]} {
    %c0 = arith.constant 0 : index
    %c0_0 = arith.constant 0 : index
    %0 = vector.load %arg2[%c0, %c0_0] : memref<32x32xf32, #tpu.memory_space<vmem>>, vector<32x32xf32>
    %c0_1 = arith.constant 0 : index
    %c0_2 = arith.constant 0 : index
    %1 = vector.load %arg1[%c0_1, %c0_2] : memref<8x32xf32, #tpu.memory_space<vmem>>, vector<8x32xf32>
    %cst = arith.constant dense<0.000000e+00> : vector<8x32xf32>
    %2 = tpu.matmul %1, %0, %cst {dimension_numbers = #tpu.dot_dimension_numbers<[1], [1], [0], [0], [0, 0, 1, 0], [], []>} : vector<8x32xf32>, vector<32x32xf32>, vector<8x32xf32> -> vector<8x32xf32>
    %c0_3 = arith.constant 0 : index
    %c0_4 = arith.constant 0 : index
    %3 = vector.load %arg3[%c0_3, %c0_4] : memref<1x32xf32, #tpu.memory_space<vmem>>, vector<1x32xf32>
    %4 = vector.broadcast %3 : vector<1x32xf32> to vector<8x32xf32>
    %5 = arith.addf %2, %4 : vector<8x32xf32>
    %cst_5 = arith.constant 0.000000e+00 : f32
    %6 = vector.broadcast %cst_5 : f32 to vector<8x32xf32>
    %7 = arith.maximumf %5, %6 : vector<8x32xf32>
    %c0_6 = arith.constant 0 : index
    %c0_7 = arith.constant 0 : index
    %8 = vector.load %arg4[%c0_6, %c0_7] : memref<128x32xf32, #tpu.memory_space<vmem>>, vector<128x32xf32>
    %cst_8 = arith.constant dense<0.000000e+00> : vector<8x128xf32>
    %9 = tpu.matmul %7, %8, %cst_8 {dimension_numbers = #tpu.dot_dimension_numbers<[1], [1], [0], [0], [0, 0, 1, 0], [], []>} : vector<8x32xf32>, vector<128x32xf32>, vector<8x128xf32> -> vector<8x128xf32>
    %c0_9 = arith.constant 0 : index
    %c0_10 = arith.constant 0 : index
    %10 = vector.load %arg5[%c0_9, %c0_10] : memref<1x128xf32, #tpu.memory_space<vmem>>, vector<1x128xf32>
    %11 = vector.broadcast %10 : vector<1x128xf32> to vector<8x128xf32>
    %12 = arith.addf %9, %11 : vector<8x128xf32>
    %c0_11 = arith.constant 0 : index
    %c0_12 = arith.constant 0 : index
    %13 = vector.load %arg6[%c0_11, %c0_12] : memref<8x128xf32, #tpu.memory_space<vmem>>, vector<8x128xf32>
    tpu.vector_store %arg6[%c0_11, %c0_12], %12 {strides = array<i32>} : memref<8x128xf32, #tpu.memory_space<vmem>>, vector<8x128xf32>,
    return
  }
  func.func @transform_0(%arg0: i32) -> (i32, i32) {
    %c0_i32 = arith.constant 0 : i32
    %c0_i32_0 = arith.constant 0 : i32
    return %arg0, %c0_i32 : i32, i32
  }
  func.func @transform_1(%arg0: i32) -> (i32, i32) {
    %c0_i32 = arith.constant 0 : i32
    %c0_i32_0 = arith.constant 0 : i32
    %c0_i32_1 = arith.constant 0 : i32
    return %c0_i32, %c0_i32_0 : i32, i32
  }
  func.func @transform_2(%arg0: i32) -> (i32, i32) {
    %c0_i32 = arith.constant 0 : i32
    %c0_i32_0 = arith.constant 0 : i32
    %c0_i32_1 = arith.constant 0 : i32
    return %c0_i32, %c0_i32_0 : i32, i32
  }
  func.func @transform_3(%arg0: i32) -> (i32, i32) {
    %c0_i32 = arith.constant 0 : i32
    %c0_i32_0 = arith.constant 0 : i32
    %c0_i32_1 = arith.constant 0 : i32
    return %c0_i32, %c0_i32_0 : i32, i32
  }
  func.func @transform_4(%arg0: i32) -> (i32, i32) {
    %c0_i32 = arith.constant 0 : i32
    %c0_i32_0 = arith.constant 0 : i32
    %c0_i32_1 = arith.constant 0 : i32
    return %c0_i32, %c0_i32_0 : i32, i32
  }
  func.func @transform_5(%arg0: i32) -> (i32, i32) {
    %c0_i32 = arith.constant 0 : i32
    %c0_i32_0 = arith.constant 0 : i32
    return %arg0, %c0_i32 : i32, i32
  }
}

</mosaic_0001>

<llo_original>
// kernel: discriminator_forward.1
$region0: #{discriminator_forward.1}
  #allocation0 [shape = 'u32[]', space=smem, size = 0x4, offset = 0x4, fixed_abs, tag = 'smem constant byte address 0x4 - core index']
  #allocation1 [shape = 'u32[72,128]{1,0:T(1,128)}', space=vmem, size = 0x9000, scoped, tag = 'internal scratch']
  %s0 = inlined_call_operand.vmem [shape: f32[8,32], index: 0, kind: input, shape index: {}]
  %s1 = inlined_call_operand.vmem [shape: f32[32,32], index: 1, kind: input, shape index: {}]
  %s2 = inlined_call_operand.vmem [shape: f32[1,32], index: 2, kind: input, shape index: {}]
  %s3 = inlined_call_operand.vmem [shape: f32[128,32], index: 3, kind: input, shape index: {}]
  %s4 = inlined_call_operand.vmem [shape: f32[1,128], index: 4, kind: input, shape index: {}]
  %s5 = inlined_call_operand.vmem [shape: f32[8,128], index: 5, kind: output, shape index: {}]
  %s6 = sld [smem:[#allocation0]]
  $region30: #{discriminator_forward.1} parent=0
    _
  %s8 = ssub.s32 1, %s6
  %s9 = scalar_select 0, %s8, %s6
  // Predicated region
  $region2: #{discriminator_forward.1} parent=0 // pred_check
    _
  $region3: #{discriminator_forward.1} parent=0 // pred_check_branch
    %11 = sbr.rel (0) target = $region5
  $region4: #{discriminator_forward.1} parent=0 // pred_region
    _
  $region5: #{discriminator_forward.1} parent=0 // pred_fallthru
    _
  // Predicated region
  $region6: #{discriminator_forward.1} parent=0 // pred_check
    _
  $region7: #{discriminator_forward.1} parent=0 // pred_check_branch
    %13 = sbr.rel (0) target = $region9
  $region8: #{discriminator_forward.1} parent=0 // pred_region
    _
  $region9: #{discriminator_forward.1} parent=0 // pred_fallthru
    _
  // Predicated region
  $region10: #{discriminator_forward.1} parent=0 // pred_check
    _
  $region11: #{discriminator_forward.1} parent=0 // pred_check_branch
    %15 = sbr.rel (0) target = $region13
  $region12: #{discriminator_forward.1} parent=0 // pred_region
    _
  $region13: #{discriminator_forward.1} parent=0 // pred_fallthru
    _
  // Predicated region
  $region14: #{discriminator_forward.1} parent=0 // pred_check
    _
  $region15: #{discriminator_forward.1} parent=0 // pred_check_branch
    %17 = sbr.rel (0) target = $region17
  $region16: #{discriminator_forward.1} parent=0 // pred_region
    _
  $region17: #{discriminator_forward.1} parent=0 // pred_fallthru
    _
  // Predicated region
  $region18: #{discriminator_forward.1} parent=0 // pred_check
    _
  $region19: #{discriminator_forward.1} parent=0 // pred_check_branch
    %19 = sbr.rel (0) target = $region21
  $region20: #{discriminator_forward.1} parent=0 // pred_region
    _
  $region21: #{discriminator_forward.1} parent=0 // pred_fallthru
    _
  %v20 = vld [vmem:[%s1] sm:$0xff]
  %v21 = vld [vmem:[%s1 + $0x8] sm:$0xff]
  %v22 = vld [vmem:[%s1 + $0x10] sm:$0xff]
  %v23 = vld [vmem:[%s1 + $0x18] sm:$0xff]
  %v24 = vld [vmem:[%s0] sm:$0xff]
  %v25 = vld [vmem:[%s2] sm:$0x1]
  %v27 = vperm.slane %v25, 0
  %vm29 = vcmask 261120
  %v31 = vsel %vm29, %v24, 0
  %v34 = vsel %vm29, %v20, 0
  %v37 = vsel %vm29, %v21, 0
  %v40 = vsel %vm29, %v22, 0
  %v43 = vsel %vm29, %v23, 0
  %45 = vmatpush.xpose.msra.mxu0 0.0
  %46 = vmatpush.xpose.msra.mxu0 0.0
  %47 = vmatpush.xpose.msra.mxu0 0.0
  %48 = vmatpush.xpose.msra.mxu0 0.0
  %49 = vmatpush.xpose.msra.mxu0 0.0
  %50 = vmatpush.xpose.msra.mxu0 0.0
  %51 = vmatpush.xpose.msra.mxu0 0.0
  %52 = vmatpush.xpose.msra.mxu0 0.0
  %53 = vmatpush.xpose.msra.mxu0 0.0
  %54 = vmatpush.xpose.msra.mxu0 0.0
  %55 = vmatpush.xpose.msra.mxu0 0.0
  %56 = vmatpush.xpose.msra.mxu0 0.0
  %57 = vmatpush.xpose.msra.mxu0 %v43
  %58 = vmatpush.xpose.msra.mxu0 %v40
  %59 = vmatpush.xpose.msra.mxu0 %v37
  %60 = vmatpush.xpose.msra.mxu0 %v34
  %61 = vmatmul.f32.gmra.mxu0 %v31
  %v62 = vpop.f32.mrf.mxu0
  %v63 = vadd.f32 %v27, %v62
  %64 = vdwg.mxu0
  %v65 = vmax.f32 %v63, 0.0
  %v66 = vld [vmem:[%s3] sm:$0xff]
  %v67 = vld [vmem:[%s3 + $0x8] sm:$0xff]
  %v68 = vld [vmem:[%s3 + $0x10] sm:$0xff]
  %v69 = vld [vmem:[%s3 + $0x18] sm:$0xff]
  %v70 = vld [vmem:[%s3 + $0x20] sm:$0xff]
  %v71 = vld [vmem:[%s3 + $0x28] sm:$0xff]
  %v72 = vld [vmem:[%s3 + $0x30] sm:$0xff]
  %v73 = vld [vmem:[%s3 + $0x38] sm:$0xff]
  %v74 = vld [vmem:[%s3 + $0x40] sm:$0xff]
  %v75 = vld [vmem:[%s3 + $0x48] sm:$0xff]
  %v76 = vld [vmem:[%s3 + $0x50] sm:$0xff]
  %v77 = vld [vmem:[%s3 + $0x58] sm:$0xff]
  %v78 = vld [vmem:[%s3 + $0x60] sm:$0xff]
  %v79 = vld [vmem:[%s3 + $0x68] sm:$0xff]
  %v80 = vld [vmem:[%s3 + $0x70] sm:$0xff]
  %v81 = vld [vmem:[%s3 + $0x78] sm:$0xff]
  %v82 = vld [vmem:[%s4] sm:$0x1]
  %v84 = vperm.slane %v82, 0
  %v87 = vsel %vm29, %v65, 0
  %v90 = vsel %vm29, %v66, 0
  %v93 = vsel %vm29, %v67, 0
  %v96 = vsel %vm29, %v68, 0
  %v99 = vsel %vm29, %v69, 0
  %v102 = vsel %vm29, %v70, 0
  %v105 = vsel %vm29, %v71, 0
  %v108 = vsel %vm29, %v72, 0
  %v111 = vsel %vm29, %v73, 0
  %v114 = vsel %vm29, %v74, 0
  %v117 = vsel %vm29, %v75, 0
  %v120 = vsel %vm29, %v76, 0
  %v123 = vsel %vm29, %v77, 0
  %v126 = vsel %vm29, %v78, 0
  %v129 = vsel %vm29, %v79, 0
  %v132 = vsel %vm29, %v80, 0
  %v135 = vsel %vm29, %v81, 0
  %137 = vmatpush.xpose.msra.mxu0 %v135
  %138 = vmatpush.xpose.msra.mxu0 %v132
  %139 = vmatpush.xpose.msra.mxu0 %v129
  %140 = vmatpush.xpose.msra.mxu0 %v126
  %141 = vmatpush.xpose.msra.mxu0 %v123
  %142 = vmatpush.xpose.msra.mxu0 %v120
  %143 = vmatpush.xpose.msra.mxu0 %v117
  %144 = vmatpush.xpose.msra.mxu0 %v114
  %145 = vmatpush.xpose.msra.mxu0 %v111
  %146 = vmatpush.xpose.msra.mxu0 %v108
  %147 = vmatpush.xpose.msra.mxu0 %v105
  %148 = vmatpush.xpose.msra.mxu0 %v102
  %149 = vmatpush.xpose.msra.mxu0 %v99
  %150 = vmatpush.xpose.msra.mxu0 %v96
  %151 = vmatpush.xpose.msra.mxu0 %v93
  %152 = vmatpush.xpose.msra.mxu0 %v90
  %153 = vmatmul.f32.gmra.mxu0 %v87
  %v154 = vpop.f32.mrf.mxu0
  %v155 = vadd.f32 %v84, %v154
  %156 = vdwg.mxu0
  %157 = vst [vmem:[%s5] sm:$0xff] %v155
  // Predicated region
  $region22: #{discriminator_forward.1} parent=0 // pred_check
    _
  $region23: #{discriminator_forward.1} parent=0 // pred_check_branch
    %159 = sbr.rel (0) target = $region25
  $region24: #{discriminator_forward.1} parent=0 // pred_region
    _
  $region25: #{discriminator_forward.1} parent=0 // pred_fallthru
    _
  // Predicated region
  $region26: #{discriminator_forward.1} parent=0 // pred_check
    _
  $region27: #{discriminator_forward.1} parent=0 // pred_check_branch
    %161 = sbr.rel (0) target = $region29
  $region28: #{discriminator_forward.1} parent=0 // pred_region
    _
  $region29: #{discriminator_forward.1} parent=0 // pred_fallthru
    _

</llo_original>
